<compile_context>
chip_gen: v5e
topology: v5e:2x2
jax: 0.10.0
libtpu: 0.0.40
codegen_flags: <defaults>
</compile_context>

<pallas_src>
import functools

import jax
import jax.numpy as jnp
from jax.experimental import pallas as pl
from jax.experimental.pallas import tpu as pltpu


def _scaled_1x1_conv_kernel(x_ref, s_ref, w_ref, o_ref, *, compute_dtype):
    # x_ref: (Cin, HW)   s_ref: (1, Cin)   w_ref: (Cout_blk, Cin)
    # o_ref: (Cout_blk, HW)
    # Fold the per-channel scale into the small weight tile (Cout_blk*Cin VPU
    # muls, hidden under the X DMA), cast operands to bf16 for native MXU
    # throughput, accumulate in f32.
    w_scaled = (w_ref[...] * s_ref[...]).astype(compute_dtype)
    x = x_ref[...].astype(compute_dtype)
    o_ref[...] = jnp.dot(
        w_scaled, x, preferred_element_type=jnp.float32
    ).astype(o_ref.dtype)
    # TODO(synk): if the producer of x can emit bf16, take X as bf16 straight
    # from HBM to halve the dominant (Cin, HW) read (kernel is HBM-bound).
    # TODO(synk): optionally flip operand roles to produce a lane-dense
    # (HW, Cout=128) output; only worth it if the consumer accepts (N, HW, Cout)
    # without an HBM-level transpose.


def _multi_tensorcore() -> bool:
    """True when one JAX device exposes 2 TensorCores (v7x / megacore chips)."""
    try:
        kind = jax.devices()[0].device_kind.lower()
    except Exception:
        return False
    return any(tag in kind for tag in ("v7", "7x", "v4", "v5p"))


def mul_conv2d_1x1(x_nchw, scale_nc11, weight_oi11, *, use_bf16_mxu=True):
    """x_nchw: (N, Cin, H, W); scale_nc11: (1 or N, Cin, 1, 1);
    weight_oi11: (Cout, Cin, 1, 1). Returns (N, Cout, H, W)."""
    n, cin, h, w = x_nchw.shape
    cout, cin_w = weight_oi11.shape[:2]
    assert cin_w == cin, (cin_w, cin)
    hw = h * w
    s_n = scale_nc11.shape[0]

    # Free reshapes only.
    x3 = x_nchw.reshape(n, cin, hw)          # (N, Cin, HW)
    s2 = scale_nc11.reshape(s_n, cin)        # (1 or N, Cin)
    w2 = weight_oi11.reshape(cout, cin)      # (Cout, Cin)

    # 2-way Cout split only pays off when there are two TensorCores behind this
    # device AND there is no batch axis to shard instead (splitting Cout makes
    # both cores DMA the full X block; splitting the batch duplicates nothing
    # and also keeps the weight tile VMEM-resident across the whole batch).
    co_split = 2 if (_multi_tensorcore() and n == 1 and cout % 16 == 0) else 1
    co_blk = cout // co_split

    if s_n > 1:
        s_map = lambda b, co: (b, 0)   # per-sample scale
    else:
        s_map = lambda b, co: (0, 0)   # broadcast scale (this module's case)

    compute_dtype = jnp.bfloat16 if use_bf16_mxu else x_nchw.dtype

    itemsize = jnp.dtype(x_nchw.dtype).itemsize
    bytes_accessed = itemsize * (
        n * cin * hw        # X read  (dominant)
        + s_n * cin         # scale read
        + cout * cin        # weight read
        + n * cout * hw     # output write
    )

    out3 = pl.pallas_call(
        functools.partial(_scaled_1x1_conv_kernel, compute_dtype=compute_dtype),
        out_shape=jax.ShapeDtypeStruct((n, cout, hw), x_nchw.dtype),
        grid=(n, co_split),
        in_specs=[
            # X: full (Cin, HW) block; constant across the (size<=2) Cout axis.
            pl.BlockSpec((None, cin, hw), lambda b, co: (b, 0, 0)),
            # per-channel scale row
            pl.BlockSpec((1, cin), s_map),
            # weight tile: whole Cout, or half of it when megacore-split
            pl.BlockSpec((co_blk, cin), lambda b, co: (co, 0)),
        ],
        out_specs=pl.BlockSpec((None, co_blk, hw), lambda b, co: (b, co, 0)),
        compiler_params=pltpu.CompilerParams(
            dimension_semantics=("parallel", "parallel"),
        ),
        cost_estimate=pl.CostEstimate(
            flops=2 * n * cout * cin * hw,
            transcendentals=0,
            bytes_accessed=bytes_accessed,
        ),
    )(x3, s2, w2)

    return out3.reshape(n, cout, h, w)
    # TODO(synk): at N=1 this op is ~1-2 us of work and launch-overhead bound;
    # batching multiple images per call and/or fusing the producer of x into
    # this kernel is worth more than further in-kernel tuning.


def _reference(x_nchw, scale_nc11, weight_oi11):
    # Pure-JAX f32 reference of the PyTorch forward: (x * scale) -> 1x1 conv, no bias.
    scaled = x_nchw * scale_nc11
    return jax.lax.conv_general_dilated(
        scaled, weight_oi11, window_strides=(1, 1), padding="VALID",
        dimension_numbers=("NCHW", "OIHW", "NCHW"),
        precision=jax.lax.Precision.HIGHEST,
    )


if __name__ == "__main__":
    key = jax.random.PRNGKey(0)
    k1, k2, k3 = jax.random.split(key, 3)

    # Shapes implied by the module: Conv2d(768 -> 128, 1x1, bias=False).
    N, CIN, H, W, COUT = 1, 768, 14, 14, 128

    x209 = jax.random.normal(k1, (N, CIN, H, W), dtype=jnp.float32)
    x214 = jax.random.normal(k2, (1, CIN, 1, 1), dtype=jnp.float32)
    # Deterministic synthetic conv weight (Kaiming-ish scaling).
    w_conv = jax.random.normal(k3, (COUT, CIN, 1, 1), dtype=jnp.float32) * (1.0 / CIN) ** 0.5

    out = mul_conv2d_1x1(x209, x214, w_conv)
    out = jax.block_until_ready(out)

    ref = _reference(x209, x214, w_conv)
    assert out.shape == (N, COUT, H, W), out.shape
    # bf16 MXU operands with f32 accumulation over a 768-long contraction:
    # tolerance sized accordingly (expected max abs err ~1e-2 at these shapes).
    assert jnp.allclose(out, ref, atol=3e-2, rtol=3e-2), "mismatch vs reference"

    print("KERNEL_OK")
</pallas_src>

<mosaic_0001>
module attributes {stable_mosaic.version = 11 : i64} {
  func.func @_scaled_1x1_conv_kernel(%arg0: i32, %arg1: i32, %arg2: memref<1x768x196xf32, #tpu.memory_space<vmem>>, %arg3: memref<1x768xf32, #tpu.memory_space<vmem>>, %arg4: memref<128x768xf32, #tpu.memory_space<vmem>>, %arg5: memref<1x128x196xf32, #tpu.memory_space<vmem>>) attributes {dimension_semantics = [#tpu.dimension_semantics<parallel>, #tpu.dimension_semantics<parallel>], iteration_bounds = array<i64: 1, 1>, scalar_prefetch = 0 : i64, scratch_operands = 0 : i64, tpu.core_type = #tpu.core_type<tc>, window_params = [{transform_indices = @transform_0, window_bounds = array<i64: 1, 768, 196>}, {pipeline_mode = #tpu.pipeline_mode<synchronous>, transform_indices = @transform_1, window_bounds = array<i64: 1, 768>}, {transform_indices = @transform_2, window_bounds = array<i64: 128, 768>}, {transform_indices = @transform_3, window_bounds = array<i64: 1, 128, 196>}]} {
    %c0 = arith.constant 0 : index
    %c0_0 = arith.constant 0 : index
    %0 = vector.load %arg4[%c0, %c0_0] : memref<128x768xf32, #tpu.memory_space<vmem>>, vector<128x768xf32>
    %c0_1 = arith.constant 0 : index
    %c0_2 = arith.constant 0 : index
    %1 = vector.load %arg3[%c0_1, %c0_2] : memref<1x768xf32, #tpu.memory_space<vmem>>, vector<1x768xf32>
    %2 = vector.broadcast %1 : vector<1x768xf32> to vector<128x768xf32>
    %3 = arith.mulf %0, %2 : vector<128x768xf32>
    %4 = arith.truncf %3 : vector<128x768xf32> to vector<128x768xbf16>
    %c0_3 = arith.constant 0 : index
    %c0_4 = arith.constant 0 : index
    %c0_5 = arith.constant 0 : index
    %5 = vector.load %arg2[%c0_3, %c0_4, %c0_5] : memref<1x768x196xf32, #tpu.memory_space<vmem>>, vector<1x768x196xf32>
    %6 = vector.shape_cast %5 : vector<1x768x196xf32> to vector<768x196xf32>
    %7 = arith.truncf %6 : vector<768x196xf32> to vector<768x196xbf16>
    %cst = arith.constant dense<0.000000e+00> : vector<128x196xf32>
    %8 = tpu.matmul %4, %7, %cst {dimension_numbers = #tpu.dot_dimension_numbers<[1], [0], [0], [1], [0, 0, 1, 1], [], []>} : vector<128x768xbf16>, vector<768x196xbf16>, vector<128x196xf32> -> vector<128x196xf32>
    %c0_6 = arith.constant 0 : index
    %c0_7 = arith.constant 0 : index
    %c0_8 = arith.constant 0 : index
    %9 = vector.load %arg5[%c0_6, %c0_7, %c0_8] : memref<1x128x196xf32, #tpu.memory_space<vmem>>, vector<1x128x196xf32>
    %10 = vector.shape_cast %9 : vector<1x128x196xf32> to vector<128x196xf32>
    %11 = vector.shape_cast %8 : vector<128x196xf32> to vector<1x128x196xf32>
    tpu.vector_store %arg5[%c0_6, %c0_7, %c0_8], %11 {strides = array<i32>} : memref<1x128x196xf32, #tpu.memory_space<vmem>>, vector<1x128x196xf32>,
    return
  }
  func.func @transform_0(%arg0: i32, %arg1: i32) -> (i32, i32, i32) {
    %c0_i32 = arith.constant 0 : i32
    %c0_i32_0 = arith.constant 0 : i32
    %c0_i32_1 = arith.constant 0 : i32
    return %arg0, %c0_i32, %c0_i32_0 : i32, i32, i32
  }
  func.func @transform_1(%arg0: i32, %arg1: i32) -> (i32, i32) {
    %c0_i32 = arith.constant 0 : i32
    %c0_i32_0 = arith.constant 0 : i32
    %c0_i32_1 = arith.constant 0 : i32
    return %c0_i32, %c0_i32_0 : i32, i32
  }
  func.func @transform_2(%arg0: i32, %arg1: i32) -> (i32, i32) {
    %c0_i32 = arith.constant 0 : i32
    %c0_i32_0 = arith.constant 0 : i32
    return %arg1, %c0_i32 : i32, i32
  }
  func.func @transform_3(%arg0: i32, %arg1: i32) -> (i32, i32, i32) {
    %c0_i32 = arith.constant 0 : i32
    %c0_i32_0 = arith.constant 0 : i32
    return %arg0, %arg1, %c0_i32 : i32, i32, i32
  }
}

</mosaic_0001>

<llo_original>
// kernel: tpu_custom_call.1
$region0: #{tpu_custom_call.1}
  #allocation0 [shape = 'u32[]', space=smem, size = 0x4, offset = 0x4, fixed_abs, tag = 'smem constant byte address 0x4 - core index']
  #allocation1 [shape = 'u32[72,128]{1,0:T(1,128)}', space=vmem, size = 0x9000, scoped, tag = 'internal scratch']
  %s0 = inlined_call_operand.vmem [shape: f32[1,768,196], index: 0, kind: input, shape index: {}]
  %s1 = inlined_call_operand.vmem [shape: f32[1,768], index: 1, kind: input, shape index: {}]
  %s2 = inlined_call_operand.vmem [shape: f32[128,768], index: 2, kind: input, shape index: {}]
  %s3 = inlined_call_operand.vmem [shape: f32[1,128,196], index: 3, kind: output, shape index: {}]
  %s4 = sld [smem:[#allocation0]]
  $region22: #{tpu_custom_call.1} parent=0
    _
  %s6 = ssub.s32 1, %s4
  %s7 = scalar_select 0, %s6, %s4
  // Predicated region
  $region2: #{tpu_custom_call.1} parent=0 // pred_check
    _
  $region3: #{tpu_custom_call.1} parent=0 // pred_check_branch
    %9 = sbr.rel (0) target = $region5
  $region4: #{tpu_custom_call.1} parent=0 // pred_region
    _
  $region5: #{tpu_custom_call.1} parent=0 // pred_fallthru
    _
  // Predicated region
  $region6: #{tpu_custom_call.1} parent=0 // pred_check
    _
  $region7: #{tpu_custom_call.1} parent=0 // pred_check_branch
    %11 = sbr.rel (0) target = $region9
  $region8: #{tpu_custom_call.1} parent=0 // pred_region
    _
  $region9: #{tpu_custom_call.1} parent=0 // pred_fallthru
    _
  // Predicated region
  $region10: #{tpu_custom_call.1} parent=0 // pred_check
    _
  $region11: #{tpu_custom_call.1} parent=0 // pred_check_branch
    %13 = sbr.rel (0) target = $region13
  $region12: #{tpu_custom_call.1} parent=0 // pred_region
    _
  $region13: #{tpu_custom_call.1} parent=0 // pred_fallthru
    _
  %v14 = vld [vmem:[%s2] sm:$0xff]
  %v15 = vld [vmem:[%s2 + $0x8] sm:$0xff]
  %v16 = vld [vmem:[%s2 + $0x10] sm:$0xff]
  %v17 = vld [vmem:[%s2 + $0x18] sm:$0xff]
  %v18 = vld [vmem:[%s2 + $0x20] sm:$0xff]
  %v19 = vld [vmem:[%s2 + $0x28] sm:$0xff]
  %v20 = vld [vmem:[%s2 + $0x30] sm:$0xff]
  %v21 = vld [vmem:[%s2 + $0x38] sm:$0xff]
  %v22 = vld [vmem:[%s2 + $0x40] sm:$0xff]
  %v23 = vld [vmem:[%s2 + $0x48] sm:$0xff]
  %v24 = vld [vmem:[%s2 + $0x50] sm:$0xff]
  %v25 = vld [vmem:[%s2 + $0x58] sm:$0xff]
  %v26 = vld [vmem:[%s2 + $0x60] sm:$0xff]
  %v27 = vld [vmem:[%s2 + $0x68] sm:$0xff]
  %v28 = vld [vmem:[%s2 + $0x70] sm:$0xff]
  %v29 = vld [vmem:[%s2 + $0x78] sm:$0xff]
  %v30 = vld [vmem:[%s2 + $0x80] sm:$0xff]
  %v31 = vld [vmem:[%s2 + $0x88] sm:$0xff]
  %v32 = vld [vmem:[%s2 + $0x90] sm:$0xff]
  %v33 = vld [vmem:[%s2 + $0x98] sm:$0xff]
  %v34 = vld [vmem:[%s2 + $0xa0] sm:$0xff]
  %v35 = vld [vmem:[%s2 + $0xa8] sm:$0xff]
  %v36 = vld [vmem:[%s2 + $0xb0] sm:$0xff]
  %v37 = vld [vmem:[%s2 + $0xb8] sm:$0xff]
  %v38 = vld [vmem:[%s2 + $0xc0] sm:$0xff]
  %v39 = vld [vmem:[%s2 + $0xc8] sm:$0xff]
  %v40 = vld [vmem:[%s2 + $0xd0] sm:$0xff]
  %v41 = vld [vmem:[%s2 + $0xd8] sm:$0xff]
  %v42 = vld [vmem:[%s2 + $0xe0] sm:$0xff]
  %v43 = vld [vmem:[%s2 + $0xe8] sm:$0xff]
  %v44 = vld [vmem:[%s2 + $0xf0] sm:$0xff]
  %v45 = vld [vmem:[%s2 + $0xf8] sm:$0xff]
  %v46 = vld [vmem:[%s2 + $0x100] sm:$0xff]
  %v47 = vld [vmem:[%s2 + $0x108] sm:$0xff]
  %v48 = vld [vmem:[%s2 + $0x110] sm:$0xff]
  %v49 = vld [vmem:[%s2 + $0x118] sm:$0xff]
  %v50 = vld [vmem:[%s2 + $0x120] sm:$0xff]
  %v51 = vld [vmem:[%s2 + $0x128] sm:$0xff]
  %v52 = vld [vmem:[%s2 + $0x130] sm:$0xff]
  %v53 = vld [vmem:[%s2 + $0x138] sm:$0xff]
  %v54 = vld [vmem:[%s2 + $0x140] sm:$0xff]
  %v55 = vld [vmem:[%s2 + $0x148] sm:$0xff]
  %v56 = vld [vmem:[%s2 + $0x150] sm:$0xff]
  %v57 = vld [vmem:[%s2 + $0x158] sm:$0xff]
  %v58 = vld [vmem:[%s2 + $0x160] sm:$0xff]
  %v59 = vld [vmem:[%s2 + $0x168] sm:$0xff]
  %v60 = vld [vmem:[%s2 + $0x170] sm:$0xff]
  %v61 = vld [vmem:[%s2 + $0x178] sm:$0xff]
  %v62 = vld [vmem:[%s2 + $0x180] sm:$0xff]
  %v63 = vld [vmem:[%s2 + $0x188] sm:$0xff]
  %v64 = vld [vmem:[%s2 + $0x190] sm:$0xff]
  %v65 = vld [vmem:[%s2 + $0x198] sm:$0xff]
  %v66 = vld [vmem:[%s2 + $0x1a0] sm:$0xff]
  %v67 = vld [vmem:[%s2 + $0x1a8] sm:$0xff]
  %v68 = vld [vmem:[%s2 + $0x1b0] sm:$0xff]
  %v69 = vld [vmem:[%s2 + $0x1b8] sm:$0xff]
  %v70 = vld [vmem:[%s2 + $0x1c0] sm:$0xff]
  %v71 = vld [vmem:[%s2 + $0x1c8] sm:$0xff]
  %v72 = vld [vmem:[%s2 + $0x1d0] sm:$0xff]
  %v73 = vld [vmem:[%s2 + $0x1d8] sm:$0xff]
  %v74 = vld [vmem:[%s2 + $0x1e0] sm:$0xff]
  %v75 = vld [vmem:[%s2 + $0x1e8] sm:$0xff]
  %v76 = vld [vmem:[%s2 + $0x1f0] sm:$0xff]
  %v77 = vld [vmem:[%s2 + $0x1f8] sm:$0xff]
  %v78 = vld [vmem:[%s2 + $0x200] sm:$0xff]
  %v79 = vld [vmem:[%s2 + $0x208] sm:$0xff]
  %v80 = vld [vmem:[%s2 + $0x210] sm:$0xff]
  %v81 = vld [vmem:[%s2 + $0x218] sm:$0xff]
  %v82 = vld [vmem:[%s2 + $0x220] sm:$0xff]
  %v83 = vld [vmem:[%s2 + $0x228] sm:$0xff]
  %v84 = vld [vmem:[%s2 + $0x230] sm:$0xff]
  %v85 = vld [vmem:[%s2 + $0x238] sm:$0xff]
  %v86 = vld [vmem:[%s2 + $0x240] sm:$0xff]
  %v87 = vld [vmem:[%s2 + $0x248] sm:$0xff]
  %v88 = vld [vmem:[%s2 + $0x250] sm:$0xff]
  %v89 = vld [vmem:[%s2 + $0x258] sm:$0xff]
  %v90 = vld [vmem:[%s2 + $0x260] sm:$0xff]
  %v91 = vld [vmem:[%s2 + $0x268] sm:$0xff]
  %v92 = vld [vmem:[%s2 + $0x270] sm:$0xff]
  %v93 = vld [vmem:[%s2 + $0x278] sm:$0xff]
  %v94 = vld [vmem:[%s2 + $0x280] sm:$0xff]
  %v95 = vld [vmem:[%s2 + $0x288] sm:$0xff]
  %v96 = vld [vmem:[%s2 + $0x290] sm:$0xff]
  %v97 = vld [vmem:[%s2 + $0x298] sm:$0xff]
  %v98 = vld [vmem:[%s2 + $0x2a0] sm:$0xff]
  %v99 = vld [vmem:[%s2 + $0x2a8] sm:$0xff]
  %v100 = vld [vmem:[%s2 + $0x2b0] sm:$0xff]
  %v101 = vld [vmem:[%s2 + $0x2b8] sm:$0xff]
  %v102 = vld [vmem:[%s2 + $0x2c0] sm:$0xff]
  %v103 = vld [vmem:[%s2 + $0x2c8] sm:$0xff]
  %v104 = vld [vmem:[%s2 + $0x2d0] sm:$0xff]
  %v105 = vld [vmem:[%s2 + $0x2d8] sm:$0xff]
  %v106 = vld [vmem:[%s2 + $0x2e0] sm:$0xff]
  %v107 = vld [vmem:[%s2 + $0x2e8] sm:$0xff]
  %v108 = vld [vmem:[%s2 + $0x2f0] sm:$0xff]
  %v109 = vld [vmem:[%s2 + $0x2f8] sm:$0xff]
  %v110 = vld [vmem:[%s1] sm:$0x3f]
  %v112 = vperm.slane %v110, 0
  %v113 = vperm.slane %v110, 1
  %v114 = vperm.slane %v110, 2
  %v115 = vperm.slane %v110, 3
  %v116 = vperm.slane %v110, 4
  %v117 = vperm.slane %v110, 5
  %v124 = vmul.f32 %v14, %v112
  %v125 = vmul.f32 %v15, %v113
  %v126 = vmul.f32 %v16, %v114
  %v127 = vmul.f32 %v17, %v115
  %v128 = vmul.f32 %v18, %v116
  %v129 = vmul.f32 %v19, %v117
  %v130 = vmul.f32 %v20, %v112
  %v131 = vmul.f32 %v21, %v113
  %v132 = vmul.f32 %v22, %v114
  %v133 = vmul.f32 %v23, %v115
  %v134 = vmul.f32 %v24, %v116
  %v135 = vmul.f32 %v25, %v117
  %v136 = vmul.f32 %v26, %v112
  %v137 = vmul.f32 %v27, %v113
  %v138 = vmul.f32 %v28, %v114
  %v139 = vmul.f32 %v29, %v115
  %v140 = vmul.f32 %v30, %v116
  %v141 = vmul.f32 %v31, %v117
  %v142 = vmul.f32 %v32, %v112
  %v143 = vmul.f32 %v33, %v113
  %v144 = vmul.f32 %v34, %v114
  %v145 = vmul.f32 %v35, %v115
  %v146 = vmul.f32 %v36, %v116
  %v147 = vmul.f32 %v37, %v117
  %v148 = vmul.f32 %v38, %v112
  %v149 = vmul.f32 %v39, %v113
  %v150 = vmul.f32 %v40, %v114
  %v151 = vmul.f32 %v41, %v115
  %v152 = vmul.f32 %v42, %v116
  %v153 = vmul.f32 %v43, %v117
  %v154 = vmul.f32 %v44, %v112
  %v155 = vmul.f32 %v45, %v113
  %v156 = vmul.f32 %v46, %v114
  %v157 = vmul.f32 %v47, %v115
  %v158 = vmul.f32 %v48, %v116
  %v159 = vmul.f32 %v49, %v117
  %v160 = vmul.f32 %v50, %v112
  %v161 = vmul.f32 %v51, %v113
  %v162 = vmul.f32 %v52, %v114
  %v163 = vmul.f32 %v53, %v115
  %v164 = vmul.f32 %v54, %v116
  %v165 = vmul.f32 %v55, %v117
  %v166 = vmul.f32 %v56, %v112
  %v167 = vmul.f32 %v57, %v113
  %v168 = vmul.f32 %v58, %v114
  %v169 = vmul.f32 %v59, %v115
  %v170 = vmul.f32 %v60, %v116
  %v171 = vmul.f32 %v61, %v117
  %v172 = vmul.f32 %v62, %v112
  %v173 = vmul.f32 %v63, %v113
  %v174 = vmul.f32 %v64, %v114
  %v175 = vmul.f32 %v65, %v115
  %v176 = vmul.f32 %v66, %v116
  %v177 = vmul.f32 %v67, %v117
  %v178 = vmul.f32 %v68, %v112
  %v179 = vmul.f32 %v69, %v113
  %v180 = vmul.f32 %v70, %v114
  %v181 = vmul.f32 %v71, %v115
  %v182 = vmul.f32 %v72, %v116
  %v183 = vmul.f32 %v73, %v117
  %v184 = vmul.f32 %v74, %v112
  %v185 = vmul.f32 %v75, %v113
  %v186 = vmul.f32 %v76, %v114
  %v187 = vmul.f32 %v77, %v115
  %v188 = vmul.f32 %v78, %v116
  %v189 = vmul.f32 %v79, %v117
  %v190 = vmul.f32 %v80, %v112
  %v191 = vmul.f32 %v81, %v113
  %v192 = vmul.f32 %v82, %v114
  %v193 = vmul.f32 %v83, %v115
  %v194 = vmul.f32 %v84, %v116
  %v195 = vmul.f32 %v85, %v117
  %v196 = vmul.f32 %v86, %v112
  %v197 = vmul.f32 %v87, %v113
  %v198 = vmul.f32 %v88, %v114
  %v199 = vmul.f32 %v89, %v115
  %v200 = vmul.f32 %v90, %v116
  %v201 = vmul.f32 %v91, %v117
  %v202 = vmul.f32 %v92, %v112
  %v203 = vmul.f32 %v93, %v113
  %v204 = vmul.f32 %v94, %v114
  %v205 = vmul.f32 %v95, %v115
  %v206 = vmul.f32 %v96, %v116
  %v207 = vmul.f32 %v97, %v117
  %v208 = vmul.f32 %v98, %v112
  %v209 = vmul.f32 %v99, %v113
  %v210 = vmul.f32 %v100, %v114
  %v211 = vmul.f32 %v101, %v115
  %v212 = vmul.f32 %v102, %v116
  %v213 = vmul.f32 %v103, %v117
  %v214 = vmul.f32 %v104, %v112
  %v215 = vmul.f32 %v105, %v113
  %v216 = vmul.f32 %v106, %v114
  %v217 = vmul.f32 %v107, %v115
  %v218 = vmul.f32 %v108, %v116
  %v219 = vmul.f32 %v109, %v117
  %v220 = vpack.c.bf16 %v130, %v124
  %v221 = vpack.c.bf16 %v131, %v125
  %v222 = vpack.c.bf16 %v132, %v126
  %v223 = vpack.c.bf16 %v133, %v127
  %v224 = vpack.c.bf16 %v134, %v128
  %v225 = vpack.c.bf16 %v135, %v129
  %v226 = vpack.c.bf16 %v142, %v136
  %v227 = vpack.c.bf16 %v143, %v137
  %v228 = vpack.c.bf16 %v144, %v138
  %v229 = vpack.c.bf16 %v145, %v139
  %v230 = vpack.c.bf16 %v146, %v140
  %v231 = vpack.c.bf16 %v147, %v141
  %v232 = vpack.c.bf16 %v154, %v148
  %v233 = vpack.c.bf16 %v155, %v149
  %v234 = vpack.c.bf16 %v156, %v150
  %v235 = vpack.c.bf16 %v157, %v151
  %v236 = vpack.c.bf16 %v158, %v152
  %v237 = vpack.c.bf16 %v159, %v153
  %v238 = vpack.c.bf16 %v166, %v160
  %v239 = vpack.c.bf16 %v167, %v161
  %v240 = vpack.c.bf16 %v168, %v162
  %v241 = vpack.c.bf16 %v169, %v163
  %v242 = vpack.c.bf16 %v170, %v164
  %v243 = vpack.c.bf16 %v171, %v165
  %v244 = vpack.c.bf16 %v178, %v172
  %v245 = vpack.c.bf16 %v179, %v173
  %v246 = vpack.c.bf16 %v180, %v174
  %v247 = vpack.c.bf16 %v181, %v175
  %v248 = vpack.c.bf16 %v182, %v176
  %v249 = vpack.c.bf16 %v183, %v177
  %v250 = vpack.c.bf16 %v190, %v184
  %v251 = vpack.c.bf16 %v191, %v185
  %v252 = vpack.c.bf16 %v192, %v186
  %v253 = vpack.c.bf16 %v193, %v187
  %v254 = vpack.c.bf16 %v194, %v188
  %v255 = vpack.c.bf16 %v195, %v189
  %v256 = vpack.c.bf16 %v202, %v196
  %v257 = vpack.c.bf16 %v203, %v197
  %v258 = vpack.c.bf16 %v204, %v198
  %v259 = vpack.c.bf16 %v205, %v199
  %v260 = vpack.c.bf16 %v206, %v200
  %v261 = vpack.c.bf16 %v207, %v201
  %v262 = vpack.c.bf16 %v214, %v208
  %v263 = vpack.c.bf16 %v215, %v209
  %v264 = vpack.c.bf16 %v216, %v210
  %v265 = vpack.c.bf16 %v217, %v211
  %v266 = vpack.c.bf16 %v218, %v212
  %v267 = vpack.c.bf16 %v219, %v213
  %v268 = vld [vmem:[%s0] sm:$0xff]
  %v269 = vld [vmem:[%s0 + $0x8] sm:$0xff]
  %v270 = vld [vmem:[%s0 + $0x10] sm:$0xff]
  %v271 = vld [vmem:[%s0 + $0x18] sm:$0xff]
  %v272 = vld [vmem:[%s0 + $0x20] sm:$0xff]
  %v273 = vld [vmem:[%s0 + $0x28] sm:$0xff]
  %v274 = vld [vmem:[%s0 + $0x30] sm:$0xff]
  %v275 = vld [vmem:[%s0 + $0x38] sm:$0xff]
  %v276 = vld [vmem:[%s0 + $0x40] sm:$0xff]
  %v277 = vld [vmem:[%s0 + $0x48] sm:$0xff]
  %v278 = vld [vmem:[%s0 + $0x50] sm:$0xff]
  %v279 = vld [vmem:[%s0 + $0x58] sm:$0xff]
  %v280 = vld [vmem:[%s0 + $0x60] sm:$0xff]
  %v281 = vld [vmem:[%s0 + $0x68] sm:$0xff]
  %v282 = vld [vmem:[%s0 + $0x70] sm:$0xff]
  %v283 = vld [vmem:[%s0 + $0x78] sm:$0xff]
  %v284 = vld [vmem:[%s0 + $0x80] sm:$0xff]
  %v285 = vld [vmem:[%s0 + $0x88] sm:$0xff]
  %v286 = vld [vmem:[%s0 + $0x90] sm:$0xff]
  %v287 = vld [vmem:[%s0 + $0x98] sm:$0xff]
  %v288 = vld [vmem:[%s0 + $0xa0] sm:$0xff]
  %v289 = vld [vmem:[%s0 + $0xa8] sm:$0xff]
  %v290 = vld [vmem:[%s0 + $0xb0] sm:$0xff]
  %v291 = vld [vmem:[%s0 + $0xb8] sm:$0xff]
  %v292 = vld [vmem:[%s0 + $0xc0] sm:$0xff]
  %v293 = vld [vmem:[%s0 + $0xc8] sm:$0xff]
  %v294 = vld [vmem:[%s0 + $0xd0] sm:$0xff]
  %v295 = vld [vmem:[%s0 + $0xd8] sm:$0xff]
  %v296 = vld [vmem:[%s0 + $0xe0] sm:$0xff]
  %v297 = vld [vmem:[%s0 + $0xe8] sm:$0xff]
  %v298 = vld [vmem:[%s0 + $0xf0] sm:$0xff]
  %v299 = vld [vmem:[%s0 + $0xf8] sm:$0xff]
  %v300 = vld [vmem:[%s0 + $0x100] sm:$0xff]
  %v301 = vld [vmem:[%s0 + $0x108] sm:$0xff]
  %v302 = vld [vmem:[%s0 + $0x110] sm:$0xff]
  %v303 = vld [vmem:[%s0 + $0x118] sm:$0xff]
  %v304 = vld [vmem:[%s0 + $0x120] sm:$0xff]
  %v305 = vld [vmem:[%s0 + $0x128] sm:$0xff]
  %v306 = vld [vmem:[%s0 + $0x130] sm:$0xff]
  %v307 = vld [vmem:[%s0 + $0x138] sm:$0xff]
  %v308 = vld [vmem:[%s0 + $0x140] sm:$0xff]
  %v309 = vld [vmem:[%s0 + $0x148] sm:$0xff]
  %v310 = vld [vmem:[%s0 + $0x150] sm:$0xff]
  %v311 = vld [vmem:[%s0 + $0x158] sm:$0xff]
  %v312 = vld [vmem:[%s0 + $0x160] sm:$0xff]
  %v313 = vld [vmem:[%s0 + $0x168] sm:$0xff]
  %v314 = vld [vmem:[%s0 + $0x170] sm:$0xff]
  %v315 = vld [vmem:[%s0 + $0x178] sm:$0xff]
  %v316 = vld [vmem:[%s0 + $0x180] sm:$0xff]
  %v317 = vld [vmem:[%s0 + $0x188] sm:$0xff]
  %v318 = vld [vmem:[%s0 + $0x190] sm:$0xff]
  %v319 = vld [vmem:[%s0 + $0x198] sm:$0xff]
  %v320 = vld [vmem:[%s0 + $0x1a0] sm:$0xff]
  %v321 = vld [vmem:[%s0 + $0x1a8] sm:$0xff]
  %v322 = vld [vmem:[%s0 + $0x1b0] sm:$0xff]
  %v323 = vld [vmem:[%s0 + $0x1b8] sm:$0xff]
  %v324 = vld [vmem:[%s0 + $0x1c0] sm:$0xff]
  %v325 = vld [vmem:[%s0 + $0x1c8] sm:$0xff]
  %v326 = vld [vmem:[%s0 + $0x1d0] sm:$0xff]
  %v327 = vld [vmem:[%s0 + $0x1d8] sm:$0xff]
  %v328 = vld [vmem:[%s0 + $0x1e0] sm:$0xff]
  %v329 = vld [vmem:[%s0 + $0x1e8] sm:$0xff]
  %v330 = vld [vmem:[%s0 + $0x1f0] sm:$0xff]
  %v331 = vld [vmem:[%s0 + $0x1f8] sm:$0xff]
  %v332 = vld [vmem:[%s0 + $0x200] sm:$0xff]
  %v333 = vld [vmem:[%s0 + $0x208] sm:$0xff]
  %v334 = vld [vmem:[%s0 + $0x210] sm:$0xff]
  %v335 = vld [vmem:[%s0 + $0x218] sm:$0xff]
  %v336 = vld [vmem:[%s0 + $0x220] sm:$0xff]
  %v337 = vld [vmem:[%s0 + $0x228] sm:$0xff]
  %v338 = vld [vmem:[%s0 + $0x230] sm:$0xff]
  %v339 = vld [vmem:[%s0 + $0x238] sm:$0xff]
  %v340 = vld [vmem:[%s0 + $0x240] sm:$0xff]
  %v341 = vld [vmem:[%s0 + $0x248] sm:$0xff]
  %v342 = vld [vmem:[%s0 + $0x250] sm:$0xff]
  %v343 = vld [vmem:[%s0 + $0x258] sm:$0xff]
  %v344 = vld [vmem:[%s0 + $0x260] sm:$0xff]
  %v345 = vld [vmem:[%s0 + $0x268] sm:$0xff]
  %v346 = vld [vmem:[%s0 + $0x270] sm:$0xff]
  %v347 = vld [vmem:[%s0 + $0x278] sm:$0xff]
  %v348 = vld [vmem:[%s0 + $0x280] sm:$0xff]
  %v349 = vld [vmem:[%s0 + $0x288] sm:$0xff]
  %v350 = vld [vmem:[%s0 + $0x290] sm:$0xff]
  %v351 = vld [vmem:[%s0 + $0x298] sm:$0xff]
  %v352 = vld [vmem:[%s0 + $0x2a0] sm:$0xff]
  %v353 = vld [vmem:[%s0 + $0x2a8] sm:$0xff]
  %v354 = vld [vmem:[%s0 + $0x2b0] sm:$0xff]
  %v355 = vld [vmem:[%s0 + $0x2b8] sm:$0xff]
  %v356 = vld [vmem:[%s0 + $0x2c0] sm:$0xff]
  %v357 = vld [vmem:[%s0 + $0x2c8] sm:$0xff]
  %v358 = vld [vmem:[%s0 + $0x2d0] sm:$0xff]
  %v359 = vld [vmem:[%s0 + $0x2d8] sm:$0xff]
  %v360 = vld [vmem:[%s0 + $0x2e0] sm:$0xff]
  %v361 = vld [vmem:[%s0 + $0x2e8] sm:$0xff]
  %v362 = vld [vmem:[%s0 + $0x2f0] sm:$0xff]
  %v363 = vld [vmem:[%s0 + $0x2f8] sm:$0xff]
  %v364 = vld [vmem:[%s0 + $0x300] sm:$0xff]
  %v365 = vld [vmem:[%s0 + $0x308] sm:$0xff]
  %v366 = vld [vmem:[%s0 + $0x310] sm:$0xff]
  %v367 = vld [vmem:[%s0 + $0x318] sm:$0xff]
  %v368 = vld [vmem:[%s0 + $0x320] sm:$0xff]
  %v369 = vld [vmem:[%s0 + $0x328] sm:$0xff]
  %v370 = vld [vmem:[%s0 + $0x330] sm:$0xff]
  %v371 = vld [vmem:[%s0 + $0x338] sm:$0xff]
  %v372 = vld [vmem:[%s0 + $0x340] sm:$0xff]
  %v373 = vld [vmem:[%s0 + $0x348] sm:$0xff]
  %v374 = vld [vmem:[%s0 + $0x350] sm:$0xff]
  %v375 = vld [vmem:[%s0 + $0x358] sm:$0xff]
  %v376 = vld [vmem:[%s0 + $0x360] sm:$0xff]
  %v377 = vld [vmem:[%s0 + $0x368] sm:$0xff]
  %v378 = vld [vmem:[%s0 + $0x370] sm:$0xff]
  %v379 = vld [vmem:[%s0 + $0x378] sm:$0xff]
  %v380 = vld [vmem:[%s0 + $0x380] sm:$0xff]
  %v381 = vld [vmem:[%s0 + $0x388] sm:$0xff]
  %v382 = vld [vmem:[%s0 + $0x390] sm:$0xff]
  %v383 = vld [vmem:[%s0 + $0x398] sm:$0xff]
  %v384 = vld [vmem:[%s0 + $0x3a0] sm:$0xff]
  %v385 = vld [vmem:[%s0 + $0x3a8] sm:$0xff]
  %v386 = vld [vmem:[%s0 + $0x3b0] sm:$0xff]
  %v387 = vld [vmem:[%s0 + $0x3b8] sm:$0xff]
  %v388 = vld [vmem:[%s0 + $0x3c0] sm:$0xff]
  %v389 = vld [vmem:[%s0 + $0x3c8] sm:$0xff]
  %v390 = vld [vmem:[%s0 + $0x3d0] sm:$0xff]
  %v391 = vld [vmem:[%s0 + $0x3d8] sm:$0xff]
  %v392 = vld [vmem:[%s0 + $0x3e0] sm:$0xff]
  %v393 = vld [vmem:[%s0 + $0x3e8] sm:$0xff]
  %v394 = vld [vmem:[%s0 + $0x3f0] sm:$0xff]
  %v395 = vld [vmem:[%s0 + $0x3f8] sm:$0xff]
  %v396 = vld [vmem:[%s0 + $0x400] sm:$0xff]
  %v397 = vld [vmem:[%s0 + $0x408] sm:$0xff]
  %v398 = vld [vmem:[%s0 + $0x410] sm:$0xff]
  %v399 = vld [vmem:[%s0 + $0x418] sm:$0xff]
  %v400 = vld [vmem:[%s0 + $0x420] sm:$0xff]
  %v401 = vld [vmem:[%s0 + $0x428] sm:$0xff]
  %v402 = vld [vmem:[%s0 + $0x430] sm:$0xff]
  %v403 = vld [vmem:[%s0 + $0x438] sm:$0xff]
  %v404 = vld [vmem:[%s0 + $0x440] sm:$0xff]
  %v405 = vld [vmem:[%s0 + $0x448] sm:$0xff]
  %v406 = vld [vmem:[%s0 + $0x450] sm:$0xff]
  %v407 = vld [vmem:[%s0 + $0x458] sm:$0xff]
  %v408 = vld [vmem:[%s0 + $0x460] sm:$0xff]
  %v409 = vld [vmem:[%s0 + $0x468] sm:$0xff]
  %v410 = vld [vmem:[%s0 + $0x470] sm:$0xff]
  %v411 = vld [vmem:[%s0 + $0x478] sm:$0xff]
  %v412 = vld [vmem:[%s0 + $0x480] sm:$0xff]
  %v413 = vld [vmem:[%s0 + $0x488] sm:$0xff]
  %v414 = vld [vmem:[%s0 + $0x490] sm:$0xff]
  %v415 = vld [vmem:[%s0 + $0x498] sm:$0xff]
  %v416 = vld [vmem:[%s0 + $0x4a0] sm:$0xff]
  %v417 = vld [vmem:[%s0 + $0x4a8] sm:$0xff]
  %v418 = vld [vmem:[%s0 + $0x4b0] sm:$0xff]
  %v419 = vld [vmem:[%s0 + $0x4b8] sm:$0xff]
  %v420 = vld [vmem:[%s0 + $0x4c0] sm:$0xff]
  %v421 = vld [vmem:[%s0 + $0x4c8] sm:$0xff]
  %v422 = vld [vmem:[%s0 + $0x4d0] sm:$0xff]
  %v423 = vld [vmem:[%s0 + $0x4d8] sm:$0xff]
  %v424 = vld [vmem:[%s0 + $0x4e0] sm:$0xff]
  %v425 = vld [vmem:[%s0 + $0x4e8] sm:$0xff]
  %v426 = vld [vmem:[%s0 + $0x4f0] sm:$0xff]
  %v427 = vld [vmem:[%s0 + $0x4f8] sm:$0xff]
  %v428 = vld [vmem:[%s0 + $0x500] sm:$0xff]
  %v429 = vld [vmem:[%s0 + $0x508] sm:$0xff]
  %v430 = vld [vmem:[%s0 + $0x510] sm:$0xff]
  %v431 = vld [vmem:[%s0 + $0x518] sm:$0xff]
  %v432 = vld [vmem:[%s0 + $0x520] sm:$0xff]
  %v433 = vld [vmem:[%s0 + $0x528] sm:$0xff]
  %v434 = vld [vmem:[%s0 + $0x530] sm:$0xff]
  %v435 = vld [vmem:[%s0 + $0x538] sm:$0xff]
  %v436 = vld [vmem:[%s0 + $0x540] sm:$0xff]
  %v437 = vld [vmem:[%s0 + $0x548] sm:$0xff]
  %v438 = vld [vmem:[%s0 + $0x550] sm:$0xff]
  %v439 = vld [vmem:[%s0 + $0x558] sm:$0xff]
  %v440 = vld [vmem:[%s0 + $0x560] sm:$0xff]
  %v441 = vld [vmem:[%s0 + $0x568] sm:$0xff]
  %v442 = vld [vmem:[%s0 + $0x570] sm:$0xff]
  %v443 = vld [vmem:[%s0 + $0x578] sm:$0xff]
  %v444 = vld [vmem:[%s0 + $0x580] sm:$0xff]
  %v445 = vld [vmem:[%s0 + $0x588] sm:$0xff]
  %v446 = vld [vmem:[%s0 + $0x590] sm:$0xff]
  %v447 = vld [vmem:[%s0 + $0x598] sm:$0xff]
  %v448 = vld [vmem:[%s0 + $0x5a0] sm:$0xff]
  %v449 = vld [vmem:[%s0 + $0x5a8] sm:$0xff]
  %v450 = vld [vmem:[%s0 + $0x5b0] sm:$0xff]
  %v451 = vld [vmem:[%s0 + $0x5b8] sm:$0xff]
  %v452 = vld [vmem:[%s0 + $0x5c0] sm:$0xff]
  %v453 = vld [vmem:[%s0 + $0x5c8] sm:$0xff]
  %v454 = vld [vmem:[%s0 + $0x5d0] sm:$0xff]
  %v455 = vld [vmem:[%s0 + $0x5d8] sm:$0xff]
  %v456 = vld [vmem:[%s0 + $0x5e0] sm:$0xff]
  %v457 = vld [vmem:[%s0 + $0x5e8] sm:$0xff]
  %v458 = vld [vmem:[%s0 + $0x5f0] sm:$0xff]
  %v459 = vld [vmem:[%s0 + $0x5f8] sm:$0xff]
  %v460 = vpack.c.bf16 %v270, %v268
  %v461 = vpack.c.bf16 %v271, %v269
  %v462 = vpack.c.bf16 %v274, %v272
  %v463 = vpack.c.bf16 %v275, %v273
  %v464 = vpack.c.bf16 %v278, %v276
  %v465 = vpack.c.bf16 %v279, %v277
  %v466 = vpack.c.bf16 %v282, %v280
  %v467 = vpack.c.bf16 %v283, %v281
  %v468 = vpack.c.bf16 %v286, %v284
  %v469 = vpack.c.bf16 %v287, %v285
  %v470 = vpack.c.bf16 %v290, %v288
  %v471 = vpack.c.bf16 %v291, %v289
  %v472 = vpack.c.bf16 %v294, %v292
  %v473 = vpack.c.bf16 %v295, %v293
  %v474 = vpack.c.bf16 %v298, %v296
  %v475 = vpack.c.bf16 %v299, %v297
  %v476 = vpack.c.bf16 %v302, %v300
  %v477 = vpack.c.bf16 %v303, %v301
  %v478 = vpack.c.bf16 %v306, %v304
  %v479 = vpack.c.bf16 %v307, %v305
  %v480 = vpack.c.bf16 %v310, %v308
  %v481 = vpack.c.bf16 %v311, %v309
  %v482 = vpack.c.bf16 %v314, %v312
  %v483 = vpack.c.bf16 %v315, %v313
  %v484 = vpack.c.bf16 %v318, %v316
  %v485 = vpack.c.bf16 %v319, %v317
  %v486 = vpack.c.bf16 %v322, %v320
  %v487 = vpack.c.bf16 %v323, %v321
  %v488 = vpack.c.bf16 %v326, %v324
  %v489 = vpack.c.bf16 %v327, %v325
  %v490 = vpack.c.bf16 %v330, %v328
  %v491 = vpack.c.bf16 %v331, %v329
  %v492 = vpack.c.bf16 %v334, %v332
  %v493 = vpack.c.bf16 %v335, %v333
  %v494 = vpack.c.bf16 %v338, %v336
  %v495 = vpack.c.bf16 %v339, %v337
  %v496 = vpack.c.bf16 %v342, %v340
  %v497 = vpack.c.bf16 %v343, %v341
  %v498 = vpack.c.bf16 %v346, %v344
  %v499 = vpack.c.bf16 %v347, %v345
  %v500 = vpack.c.bf16 %v350, %v348
  %v501 = vpack.c.bf16 %v351, %v349
  %v502 = vpack.c.bf16 %v354, %v352
  %v503 = vpack.c.bf16 %v355, %v353
  %v504 = vpack.c.bf16 %v358, %v356
  %v505 = vpack.c.bf16 %v359, %v357
  %v506 = vpack.c.bf16 %v362, %v360
  %v507 = vpack.c.bf16 %v363, %v361
  %v508 = vpack.c.bf16 %v366, %v364
  %v509 = vpack.c.bf16 %v367, %v365
  %v510 = vpack.c.bf16 %v370, %v368
  %v511 = vpack.c.bf16 %v371, %v369
  %v512 = vpack.c.bf16 %v374, %v372
  %v513 = vpack.c.bf16 %v375, %v373
  %v514 = vpack.c.bf16 %v378, %v376
  %v515 = vpack.c.bf16 %v379, %v377
  %v516 = vpack.c.bf16 %v382, %v380
  %v517 = vpack.c.bf16 %v383, %v381
  %v518 = vpack.c.bf16 %v386, %v384
  %v519 = vpack.c.bf16 %v387, %v385
  %v520 = vpack.c.bf16 %v390, %v388
  %v521 = vpack.c.bf16 %v391, %v389
  %v522 = vpack.c.bf16 %v394, %v392
  %v523 = vpack.c.bf16 %v395, %v393
  %v524 = vpack.c.bf16 %v398, %v396
  %v525 = vpack.c.bf16 %v399, %v397
  %v526 = vpack.c.bf16 %v402, %v400
  %v527 = vpack.c.bf16 %v403, %v401
  %v528 = vpack.c.bf16 %v406, %v404
  %v529 = vpack.c.bf16 %v407, %v405
  %v530 = vpack.c.bf16 %v410, %v408
  %v531 = vpack.c.bf16 %v411, %v409
  %v532 = vpack.c.bf16 %v414, %v412
  %v533 = vpack.c.bf16 %v415, %v413
  %v534 = vpack.c.bf16 %v418, %v416
  %v535 = vpack.c.bf16 %v419, %v417
  %v536 = vpack.c.bf16 %v422, %v420
  %v537 = vpack.c.bf16 %v423, %v421
  %v538 = vpack.c.bf16 %v426, %v424
  %v539 = vpack.c.bf16 %v427, %v425
  %v540 = vpack.c.bf16 %v430, %v428
  %v541 = vpack.c.bf16 %v431, %v429
  %v542 = vpack.c.bf16 %v434, %v432
  %v543 = vpack.c.bf16 %v435, %v433
  %v544 = vpack.c.bf16 %v438, %v436
  %v545 = vpack.c.bf16 %v439, %v437
  %v546 = vpack.c.bf16 %v442, %v440
  %v547 = vpack.c.bf16 %v443, %v441
  %v548 = vpack.c.bf16 %v446, %v444
  %v549 = vpack.c.bf16 %v447, %v445
  %v550 = vpack.c.bf16 %v450, %v448
  %v551 = vpack.c.bf16 %v451, %v449
  %v552 = vpack.c.bf16 %v454, %v452
  %v553 = vpack.c.bf16 %v455, %v453
  %v554 = vpack.c.bf16 %v458, %v456
  %v555 = vpack.c.bf16 %v459, %v457
  %556 = vmatpush.bf16.msra.mxu0 %v474
  %557 = vmatpush.bf16.msra.mxu0 %v472
  %558 = vmatpush.bf16.msra.mxu0 %v470
  %559 = vmatpush.bf16.msra.mxu0 %v468
  %560 = vmatpush.bf16.msra.mxu0 %v466
  %561 = vmatpush.bf16.msra.mxu0 %v464
  %562 = vmatpush.bf16.msra.mxu0 %v462
  %563 = vmatpush.bf16.msra.mxu0 %v460
  %564 = vmatmul.bf16.gmra.mxu0 %v220
  %v565 = vpop.f32.mrf.mxu0
  %v566 = vadd.f32 0.0, %v565
  %v567 = vpop.f32.mrf.mxu0
  %v568 = vadd.f32 0.0, %v567
  %569 = vmatmul.bf16.gmra.mxu0 %v226
  %v570 = vpop.f32.mrf.mxu0
  %v571 = vadd.f32 0.0, %v570
  %v572 = vpop.f32.mrf.mxu0
  %v573 = vadd.f32 0.0, %v572
  %574 = vmatmul.bf16.gmra.mxu0 %v232
  %v575 = vpop.f32.mrf.mxu0
  %v576 = vadd.f32 0.0, %v575
  %v577 = vpop.f32.mrf.mxu0
  %v578 = vadd.f32 0.0, %v577
  %579 = vmatmul.bf16.gmra.mxu0 %v238
  %v580 = vpop.f32.mrf.mxu0
  %v581 = vadd.f32 0.0, %v580
  %v582 = vpop.f32.mrf.mxu0
  %v583 = vadd.f32 0.0, %v582
  %584 = vmatmul.bf16.gmra.mxu0 %v244
  %v585 = vpop.f32.mrf.mxu0
  %v586 = vadd.f32 0.0, %v585
  %v587 = vpop.f32.mrf.mxu0
  %v588 = vadd.f32 0.0, %v587
  %589 = vmatmul.bf16.gmra.mxu0 %v250
  %v590 = vpop.f32.mrf.mxu0
  %v591 = vadd.f32 0.0, %v590
  %v592 = vpop.f32.mrf.mxu0
  %v593 = vadd.f32 0.0, %v592
  %594 = vmatmul.bf16.gmra.mxu0 %v256
  %v595 = vpop.f32.mrf.mxu0
  %v596 = vadd.f32 0.0, %v595
  %v597 = vpop.f32.mrf.mxu0
  %v598 = vadd.f32 0.0, %v597
  %599 = vmatmul.bf16.gmra.mxu0 %v262
  %v600 = vpop.f32.mrf.mxu0
  %v601 = vadd.f32 0.0, %v600
  %v602 = vpop.f32.mrf.mxu0
  %v603 = vadd.f32 0.0, %v602
  %604 = vdwg.mxu0
  %605 = vmatpush.bf16.msra.mxu0 %v490
  %606 = vmatpush.bf16.msra.mxu0 %v488
  %607 = vmatpush.bf16.msra.mxu0 %v486
  %608 = vmatpush.bf16.msra.mxu0 %v484
  %609 = vmatpush.bf16.msra.mxu0 %v482
  %610 = vmatpush.bf16.msra.mxu0 %v480
  %611 = vmatpush.bf16.msra.mxu0 %v478
  %612 = vmatpush.bf16.msra.mxu0 %v476
  %613 = vmatmul.bf16.gmra.mxu0 %v221
  %v614 = vpop.f32.mrf.mxu0
  %v615 = vadd.f32 %v566, %v614
  %v616 = vpop.f32.mrf.mxu0
  %v617 = vadd.f32 %v568, %v616
  %618 = vmatmul.bf16.gmra.mxu0 %v227
  %v619 = vpop.f32.mrf.mxu0
  %v620 = vadd.f32 %v571, %v619
  %v621 = vpop.f32.mrf.mxu0
  %v622 = vadd.f32 %v573, %v621
  %623 = vmatmul.bf16.gmra.mxu0 %v233
  %v624 = vpop.f32.mrf.mxu0
  %v625 = vadd.f32 %v576, %v624
  %v626 = vpop.f32.mrf.mxu0
  %v627 = vadd.f32 %v578, %v626
  %628 = vmatmul.bf16.gmra.mxu0 %v239
  %v629 = vpop.f32.mrf.mxu0
  %v630 = vadd.f32 %v581, %v629
  %v631 = vpop.f32.mrf.mxu0
  %v632 = vadd.f32 %v583, %v631
  %633 = vmatmul.bf16.gmra.mxu0 %v245
  %v634 = vpop.f32.mrf.mxu0
  %v635 = vadd.f32 %v586, %v634
  %v636 = vpop.f32.mrf.mxu0
  %v637 = vadd.f32 %v588, %v636
  %638 = vmatmul.bf16.gmra.mxu0 %v251
  %v639 = vpop.f32.mrf.mxu0
  %v640 = vadd.f32 %v591, %v639
  %v641 = vpop.f32.mrf.mxu0
  %v642 = vadd.f32 %v593, %v641
  %643 = vmatmul.bf16.gmra.mxu0 %v257
  %v644 = vpop.f32.mrf.mxu0
  %v645 = vadd.f32 %v596, %v644
  %v646 = vpop.f32.mrf.mxu0
  %v647 = vadd.f32 %v598, %v646
  %648 = vmatmul.bf16.gmra.mxu0 %v263
  %v649 = vpop.f32.mrf.mxu0
  %v650 = vadd.f32 %v601, %v649
  %v651 = vpop.f32.mrf.mxu0
  %v652 = vadd.f32 %v603, %v651
  %653 = vdwg.mxu0
  %654 = vmatpush.bf16.msra.mxu0 %v506
  %655 = vmatpush.bf16.msra.mxu0 %v504
  %656 = vmatpush.bf16.msra.mxu0 %v502
  %657 = vmatpush.bf16.msra.mxu0 %v500
  %658 = vmatpush.bf16.msra.mxu0 %v498
  %659 = vmatpush.bf16.msra.mxu0 %v496
  %660 = vmatpush.bf16.msra.mxu0 %v494
  %661 = vmatpush.bf16.msra.mxu0 %v492
  %662 = vmatmul.bf16.gmra.mxu0 %v222
  %v663 = vpop.f32.mrf.mxu0
  %v664 = vadd.f32 %v615, %v663
  %v665 = vpop.f32.mrf.mxu0
  %v666 = vadd.f32 %v617, %v665
  %667 = vmatmul.bf16.gmra.mxu0 %v228
  %v668 = vpop.f32.mrf.mxu0
  %v669 = vadd.f32 %v620, %v668
  %v670 = vpop.f32.mrf.mxu0
  %v671 = vadd.f32 %v622, %v670
  %672 = vmatmul.bf16.gmra.mxu0 %v234
  %v673 = vpop.f32.mrf.mxu0
  %v674 = vadd.f32 %v625, %v673
  %v675 = vpop.f32.mrf.mxu0
  %v676 = vadd.f32 %v627, %v675
  %677 = vmatmul.bf16.gmra.mxu0 %v240
  %v678 = vpop.f32.mrf.mxu0
  %v679 = vadd.f32 %v630, %v678
  %v680 = vpop.f32.mrf.mxu0
  %v681 = vadd.f32 %v632, %v680
  %682 = vmatmul.bf16.gmra.mxu0 %v246
  %v683 = vpop.f32.mrf.mxu0
  %v684 = vadd.f32 %v635, %v683
  %v685 = vpop.f32.mrf.mxu0
  %v686 = vadd.f32 %v637, %v685
  %687 = vmatmul.bf16.gmra.mxu0 %v252
  %v688 = vpop.f32.mrf.mxu0
  %v689 = vadd.f32 %v640, %v688
  %v690 = vpop.f32.mrf.mxu0
  %v691 = vadd.f32 %v642, %v690
  %692 = vmatmul.bf16.gmra.mxu0 %v258
  %v693 = vpop.f32.mrf.mxu0
  %v694 = vadd.f32 %v645, %v693
  %v695 = vpop.f32.mrf.mxu0
  %v696 = vadd.f32 %v647, %v695
  %697 = vmatmul.bf16.gmra.mxu0 %v264
  %v698 = vpop.f32.mrf.mxu0
  %v699 = vadd.f32 %v650, %v698
  %v700 = vpop.f32.mrf.mxu0
  %v701 = vadd.f32 %v652, %v700
  %702 = vdwg.mxu0
  %703 = vmatpush.bf16.msra.mxu0 %v522
  %704 = vmatpush.bf16.msra.mxu0 %v520
  %705 = vmatpush.bf16.msra.mxu0 %v518
  %706 = vmatpush.bf16.msra.mxu0 %v516
  %707 = vmatpush.bf16.msra.mxu0 %v514
  %708 = vmatpush.bf16.msra.mxu0 %v512
  %709 = vmatpush.bf16.msra.mxu0 %v510
  %710 = vmatpush.bf16.msra.mxu0 %v508
  %711 = vmatmul.bf16.gmra.mxu0 %v223
  %v712 = vpop.f32.mrf.mxu0
  %v713 = vadd.f32 %v664, %v712
  %v714 = vpop.f32.mrf.mxu0
  %v715 = vadd.f32 %v666, %v714
  %716 = vmatmul.bf16.gmra.mxu0 %v229
  %v717 = vpop.f32.mrf.mxu0
  %v718 = vadd.f32 %v669, %v717
  %v719 = vpop.f32.mrf.mxu0
  %v720 = vadd.f32 %v671, %v719
  %721 = vmatmul.bf16.gmra.mxu0 %v235
  %v722 = vpop.f32.mrf.mxu0
  %v723 = vadd.f32 %v674, %v722
  %v724 = vpop.f32.mrf.mxu0
  %v725 = vadd.f32 %v676, %v724
  %726 = vmatmul.bf16.gmra.mxu0 %v241
  %v727 = vpop.f32.mrf.mxu0
  %v728 = vadd.f32 %v679, %v727
  %v729 = vpop.f32.mrf.mxu0
  %v730 = vadd.f32 %v681, %v729
  %731 = vmatmul.bf16.gmra.mxu0 %v247
  %v732 = vpop.f32.mrf.mxu0
  %v733 = vadd.f32 %v684, %v732
  %v734 = vpop.f32.mrf.mxu0
  %v735 = vadd.f32 %v686, %v734
  %736 = vmatmul.bf16.gmra.mxu0 %v253
  %v737 = vpop.f32.mrf.mxu0
  %v738 = vadd.f32 %v689, %v737
  %v739 = vpop.f32.mrf.mxu0
  %v740 = vadd.f32 %v691, %v739
  %741 = vmatmul.bf16.gmra.mxu0 %v259
  %v742 = vpop.f32.mrf.mxu0
  %v743 = vadd.f32 %v694, %v742
  %v744 = vpop.f32.mrf.mxu0
  %v745 = vadd.f32 %v696, %v744
  %746 = vmatmul.bf16.gmra.mxu0 %v265
  %v747 = vpop.f32.mrf.mxu0
  %v748 = vadd.f32 %v699, %v747
  %v749 = vpop.f32.mrf.mxu0
  %v750 = vadd.f32 %v701, %v749
  %751 = vdwg.mxu0
  %752 = vmatpush.bf16.msra.mxu0 %v538
  %753 = vmatpush.bf16.msra.mxu0 %v536
  %754 = vmatpush.bf16.msra.mxu0 %v534
  %755 = vmatpush.bf16.msra.mxu0 %v532
  %756 = vmatpush.bf16.msra.mxu0 %v530
  %757 = vmatpush.bf16.msra.mxu0 %v528
  %758 = vmatpush.bf16.msra.mxu0 %v526
  %759 = vmatpush.bf16.msra.mxu0 %v524
  %760 = vmatmul.bf16.gmra.mxu0 %v224
  %v761 = vpop.f32.mrf.mxu0
  %v762 = vadd.f32 %v713, %v761
  %v763 = vpop.f32.mrf.mxu0
  %v764 = vadd.f32 %v715, %v763
  %765 = vmatmul.bf16.gmra.mxu0 %v230
  %v766 = vpop.f32.mrf.mxu0
  %v767 = vadd.f32 %v718, %v766
  %v768 = vpop.f32.mrf.mxu0
  %v769 = vadd.f32 %v720, %v768
  %770 = vmatmul.bf16.gmra.mxu0 %v236
  %v771 = vpop.f32.mrf.mxu0
  %v772 = vadd.f32 %v723, %v771
  %v773 = vpop.f32.mrf.mxu0
  %v774 = vadd.f32 %v725, %v773
  %775 = vmatmul.bf16.gmra.mxu0 %v242
  %v776 = vpop.f32.mrf.mxu0
  %v777 = vadd.f32 %v728, %v776
  %v778 = vpop.f32.mrf.mxu0
  %v779 = vadd.f32 %v730, %v778
  %780 = vmatmul.bf16.gmra.mxu0 %v248
  %v781 = vpop.f32.mrf.mxu0
  %v782 = vadd.f32 %v733, %v781
  %v783 = vpop.f32.mrf.mxu0
  %v784 = vadd.f32 %v735, %v783
  %785 = vmatmul.bf16.gmra.mxu0 %v254
  %v786 = vpop.f32.mrf.mxu0
  %v787 = vadd.f32 %v738, %v786
  %v788 = vpop.f32.mrf.mxu0
  %v789 = vadd.f32 %v740, %v788
  %790 = vmatmul.bf16.gmra.mxu0 %v260
  %v791 = vpop.f32.mrf.mxu0
  %v792 = vadd.f32 %v743, %v791
  %v793 = vpop.f32.mrf.mxu0
  %v794 = vadd.f32 %v745, %v793
  %795 = vmatmul.bf16.gmra.mxu0 %v266
  %v796 = vpop.f32.mrf.mxu0
  %v797 = vadd.f32 %v748, %v796
  %v798 = vpop.f32.mrf.mxu0
  %v799 = vadd.f32 %v750, %v798
  %800 = vdwg.mxu0
  %801 = vmatpush.bf16.msra.mxu0 %v554
  %802 = vmatpush.bf16.msra.mxu0 %v552
  %803 = vmatpush.bf16.msra.mxu0 %v550
  %804 = vmatpush.bf16.msra.mxu0 %v548
  %805 = vmatpush.bf16.msra.mxu0 %v546
  %806 = vmatpush.bf16.msra.mxu0 %v544
  %807 = vmatpush.bf16.msra.mxu0 %v542
  %808 = vmatpush.bf16.msra.mxu0 %v540
  %809 = vmatmul.bf16.gmra.mxu0 %v225
  %v810 = vpop.f32.mrf.mxu0
  %v811 = vadd.f32 %v762, %v810
  %v812 = vpop.f32.mrf.mxu0
  %v813 = vadd.f32 %v764, %v812
  %814 = vmatmul.bf16.gmra.mxu0 %v231
  %v815 = vpop.f32.mrf.mxu0
  %v816 = vadd.f32 %v767, %v815
  %v817 = vpop.f32.mrf.mxu0
  %v818 = vadd.f32 %v769, %v817
  %819 = vmatmul.bf16.gmra.mxu0 %v237
  %v820 = vpop.f32.mrf.mxu0
  %v821 = vadd.f32 %v772, %v820
  %v822 = vpop.f32.mrf.mxu0
  %v823 = vadd.f32 %v774, %v822
  %824 = vmatmul.bf16.gmra.mxu0 %v243
  %v825 = vpop.f32.mrf.mxu0
  %v826 = vadd.f32 %v777, %v825
  %v827 = vpop.f32.mrf.mxu0
  %v828 = vadd.f32 %v779, %v827
  %829 = vmatmul.bf16.gmra.mxu0 %v249
  %v830 = vpop.f32.mrf.mxu0
  %v831 = vadd.f32 %v782, %v830
  %v832 = vpop.f32.mrf.mxu0
  %v833 = vadd.f32 %v784, %v832
  %834 = vmatmul.bf16.gmra.mxu0 %v255
  %v835 = vpop.f32.mrf.mxu0
  %v836 = vadd.f32 %v787, %v835
  %v837 = vpop.f32.mrf.mxu0
  %v838 = vadd.f32 %v789, %v837
  %839 = vmatmul.bf16.gmra.mxu0 %v261
  %v840 = vpop.f32.mrf.mxu0
  %v841 = vadd.f32 %v792, %v840
  %v842 = vpop.f32.mrf.mxu0
  %v843 = vadd.f32 %v794, %v842
  %844 = vmatmul.bf16.gmra.mxu0 %v267
  %v845 = vpop.f32.mrf.mxu0
  %v846 = vadd.f32 %v797, %v845
  %v847 = vpop.f32.mrf.mxu0
  %v848 = vadd.f32 %v799, %v847
  %849 = vdwg.mxu0
  %850 = vmatpush.bf16.msra.mxu0 %v475
  %851 = vmatpush.bf16.msra.mxu0 %v473
  %852 = vmatpush.bf16.msra.mxu0 %v471
  %853 = vmatpush.bf16.msra.mxu0 %v469
  %854 = vmatpush.bf16.msra.mxu0 %v467
  %855 = vmatpush.bf16.msra.mxu0 %v465
  %856 = vmatpush.bf16.msra.mxu0 %v463
  %857 = vmatpush.bf16.msra.mxu0 %v461
  %858 = vmatmul.bf16.gmra.mxu0 %v220
  %v859 = vpop.f32.mrf.mxu0
  %v860 = vadd.f32 0.0, %v859
  %v861 = vpop.f32.mrf.mxu0
  %v862 = vadd.f32 0.0, %v861
  %863 = vmatmul.bf16.gmra.mxu0 %v226
  %v864 = vpop.f32.mrf.mxu0
  %v865 = vadd.f32 0.0, %v864
  %v866 = vpop.f32.mrf.mxu0
  %v867 = vadd.f32 0.0, %v866
  %868 = vmatmul.bf16.gmra.mxu0 %v232
  %v869 = vpop.f32.mrf.mxu0
  %v870 = vadd.f32 0.0, %v869
  %v871 = vpop.f32.mrf.mxu0
  %v872 = vadd.f32 0.0, %v871
  %873 = vmatmul.bf16.gmra.mxu0 %v238
  %v874 = vpop.f32.mrf.mxu0
  %v875 = vadd.f32 0.0, %v874
  %v876 = vpop.f32.mrf.mxu0
  %v877 = vadd.f32 0.0, %v876
  %878 = vmatmul.bf16.gmra.mxu0 %v244
  %v879 = vpop.f32.mrf.mxu0
  %v880 = vadd.f32 0.0, %v879
  %v881 = vpop.f32.mrf.mxu0
  %v882 = vadd.f32 0.0, %v881
  %883 = vmatmul.bf16.gmra.mxu0 %v250
  %v884 = vpop.f32.mrf.mxu0
  %v885 = vadd.f32 0.0, %v884
  %v886 = vpop.f32.mrf.mxu0
  %v887 = vadd.f32 0.0, %v886
  %888 = vmatmul.bf16.gmra.mxu0 %v256
  %v889 = vpop.f32.mrf.mxu0
  %v890 = vadd.f32 0.0, %v889
  %v891 = vpop.f32.mrf.mxu0
  %v892 = vadd.f32 0.0, %v891
  %893 = vmatmul.bf16.gmra.mxu0 %v262
  %v894 = vpop.f32.mrf.mxu0
  %v895 = vadd.f32 0.0, %v894
  %v896 = vpop.f32.mrf.mxu0
  %v897 = vadd.f32 0.0, %v896
  %898 = vdwg.mxu0
  %899 = vmatpush.bf16.msra.mxu0 %v491
  %900 = vmatpush.bf16.msra.mxu0 %v489
  %901 = vmatpush.bf16.msra.mxu0 %v487
  %902 = vmatpush.bf16.msra.mxu0 %v485
  %903 = vmatpush.bf16.msra.mxu0 %v483
  %904 = vmatpush.bf16.msra.mxu0 %v481
  %905 = vmatpush.bf16.msra.mxu0 %v479
  %906 = vmatpush.bf16.msra.mxu0 %v477
  %907 = vmatmul.bf16.gmra.mxu0 %v221
  %v908 = vpop.f32.mrf.mxu0
  %v909 = vadd.f32 %v860, %v908
  %v910 = vpop.f32.mrf.mxu0
  %v911 = vadd.f32 %v862, %v910
  %912 = vmatmul.bf16.gmra.mxu0 %v227
  %v913 = vpop.f32.mrf.mxu0
  %v914 = vadd.f32 %v865, %v913
  %v915 = vpop.f32.mrf.mxu0
  %v916 = vadd.f32 %v867, %v915
  %917 = vmatmul.bf16.gmra.mxu0 %v233
  %v918 = vpop.f32.mrf.mxu0
  %v919 = vadd.f32 %v870, %v918
  %v920 = vpop.f32.mrf.mxu0
  %v921 = vadd.f32 %v872, %v920
  %922 = vmatmul.bf16.gmra.mxu0 %v239
  %v923 = vpop.f32.mrf.mxu0
  %v924 = vadd.f32 %v875, %v923
  %v925 = vpop.f32.mrf.mxu0
  %v926 = vadd.f32 %v877, %v925
  %927 = vmatmul.bf16.gmra.mxu0 %v245
  %v928 = vpop.f32.mrf.mxu0
  %v929 = vadd.f32 %v880, %v928
  %v930 = vpop.f32.mrf.mxu0
  %v931 = vadd.f32 %v882, %v930
  %932 = vmatmul.bf16.gmra.mxu0 %v251
  %v933 = vpop.f32.mrf.mxu0
  %v934 = vadd.f32 %v885, %v933
  %v935 = vpop.f32.mrf.mxu0
  %v936 = vadd.f32 %v887, %v935
  %937 = vmatmul.bf16.gmra.mxu0 %v257
  %v938 = vpop.f32.mrf.mxu0
  %v939 = vadd.f32 %v890, %v938
  %v940 = vpop.f32.mrf.mxu0
  %v941 = vadd.f32 %v892, %v940
  %942 = vmatmul.bf16.gmra.mxu0 %v263
  %v943 = vpop.f32.mrf.mxu0
  %v944 = vadd.f32 %v895, %v943
  %v945 = vpop.f32.mrf.mxu0
  %v946 = vadd.f32 %v897, %v945
  %947 = vdwg.mxu0
  %948 = vmatpush.bf16.msra.mxu0 %v507
  %949 = vmatpush.bf16.msra.mxu0 %v505
  %950 = vmatpush.bf16.msra.mxu0 %v503
  %951 = vmatpush.bf16.msra.mxu0 %v501
  %952 = vmatpush.bf16.msra.mxu0 %v499
  %953 = vmatpush.bf16.msra.mxu0 %v497
  %954 = vmatpush.bf16.msra.mxu0 %v495
  %955 = vmatpush.bf16.msra.mxu0 %v493
  %956 = vmatmul.bf16.gmra.mxu0 %v222
  %v957 = vpop.f32.mrf.mxu0
  %v958 = vadd.f32 %v909, %v957
  %v959 = vpop.f32.mrf.mxu0
  %v960 = vadd.f32 %v911, %v959
  %961 = vmatmul.bf16.gmra.mxu0 %v228
  %v962 = vpop.f32.mrf.mxu0
  %v963 = vadd.f32 %v914, %v962
  %v964 = vpop.f32.mrf.mxu0
  %v965 = vadd.f32 %v916, %v964
  %966 = vmatmul.bf16.gmra.mxu0 %v234
  %v967 = vpop.f32.mrf.mxu0
  %v968 = vadd.f32 %v919, %v967
  %v969 = vpop.f32.mrf.mxu0
  %v970 = vadd.f32 %v921, %v969
  %971 = vmatmul.bf16.gmra.mxu0 %v240
  %v972 = vpop.f32.mrf.mxu0
  %v973 = vadd.f32 %v924, %v972
  %v974 = vpop.f32.mrf.mxu0
  %v975 = vadd.f32 %v926, %v974
  %976 = vmatmul.bf16.gmra.mxu0 %v246
  %v977 = vpop.f32.mrf.mxu0
  %v978 = vadd.f32 %v929, %v977
  %v979 = vpop.f32.mrf.mxu0
  %v980 = vadd.f32 %v931, %v979
  %981 = vmatmul.bf16.gmra.mxu0 %v252
  %v982 = vpop.f32.mrf.mxu0
  %v983 = vadd.f32 %v934, %v982
  %v984 = vpop.f32.mrf.mxu0
  %v985 = vadd.f32 %v936, %v984
  %986 = vmatmul.bf16.gmra.mxu0 %v258
  %v987 = vpop.f32.mrf.mxu0
  %v988 = vadd.f32 %v939, %v987
  %v989 = vpop.f32.mrf.mxu0
  %v990 = vadd.f32 %v941, %v989
  %991 = vmatmul.bf16.gmra.mxu0 %v264
  %v992 = vpop.f32.mrf.mxu0
  %v993 = vadd.f32 %v944, %v992
  %v994 = vpop.f32.mrf.mxu0
  %v995 = vadd.f32 %v946, %v994
  %996 = vdwg.mxu0
  %997 = vmatpush.bf16.msra.mxu0 %v523
  %998 = vmatpush.bf16.msra.mxu0 %v521
  %999 = vmatpush.bf16.msra.mxu0 %v519
  %1000 = vmatpush.bf16.msra.mxu0 %v517
  %1001 = vmatpush.bf16.msra.mxu0 %v515
  %1002 = vmatpush.bf16.msra.mxu0 %v513
  %1003 = vmatpush.bf16.msra.mxu0 %v511
  %1004 = vmatpush.bf16.msra.mxu0 %v509
  %1005 = vmatmul.bf16.gmra.mxu0 %v223
  %v1006 = vpop.f32.mrf.mxu0
  %v1007 = vadd.f32 %v958, %v1006
  %v1008 = vpop.f32.mrf.mxu0
  %v1009 = vadd.f32 %v960, %v1008
  %1010 = vmatmul.bf16.gmra.mxu0 %v229
  %v1011 = vpop.f32.mrf.mxu0
  %v1012 = vadd.f32 %v963, %v1011
  %v1013 = vpop.f32.mrf.mxu0
  %v1014 = vadd.f32 %v965, %v1013
  %1015 = vmatmul.bf16.gmra.mxu0 %v235
  %v1016 = vpop.f32.mrf.mxu0
  %v1017 = vadd.f32 %v968, %v1016
  %v1018 = vpop.f32.mrf.mxu0
  %v1019 = vadd.f32 %v970, %v1018
  %1020 = vmatmul.bf16.gmra.mxu0 %v241
  %v1021 = vpop.f32.mrf.mxu0
  %v1022 = vadd.f32 %v973, %v1021
  %v1023 = vpop.f32.mrf.mxu0
  %v1024 = vadd.f32 %v975, %v1023
  %1025 = vmatmul.bf16.gmra.mxu0 %v247
  %v1026 = vpop.f32.mrf.mxu0
  %v1027 = vadd.f32 %v978, %v1026
  %v1028 = vpop.f32.mrf.mxu0
  %v1029 = vadd.f32 %v980, %v1028
  %1030 = vmatmul.bf16.gmra.mxu0 %v253
  %v1031 = vpop.f32.mrf.mxu0
  %v1032 = vadd.f32 %v983, %v1031
  %v1033 = vpop.f32.mrf.mxu0
  %v1034 = vadd.f32 %v985, %v1033
  %1035 = vmatmul.bf16.gmra.mxu0 %v259
  %v1036 = vpop.f32.mrf.mxu0
  %v1037 = vadd.f32 %v988, %v1036
  %v1038 = vpop.f32.mrf.mxu0
  %v1039 = vadd.f32 %v990, %v1038
  %1040 = vmatmul.bf16.gmra.mxu0 %v265
  %v1041 = vpop.f32.mrf.mxu0
  %v1042 = vadd.f32 %v993, %v1041
  %v1043 = vpop.f32.mrf.mxu0
  %v1044 = vadd.f32 %v995, %v1043
  %1045 = vdwg.mxu0
  %1046 = vmatpush.bf16.msra.mxu0 %v539
  %1047 = vmatpush.bf16.msra.mxu0 %v537
  %1048 = vmatpush.bf16.msra.mxu0 %v535
  %1049 = vmatpush.bf16.msra.mxu0 %v533
  %1050 = vmatpush.bf16.msra.mxu0 %v531
  %1051 = vmatpush.bf16.msra.mxu0 %v529
  %1052 = vmatpush.bf16.msra.mxu0 %v527
  %1053 = vmatpush.bf16.msra.mxu0 %v525
  %1054 = vmatmul.bf16.gmra.mxu0 %v224
  %v1055 = vpop.f32.mrf.mxu0
  %v1056 = vadd.f32 %v1007, %v1055
  %v1057 = vpop.f32.mrf.mxu0
  %v1058 = vadd.f32 %v1009, %v1057
  %1059 = vmatmul.bf16.gmra.mxu0 %v230
  %v1060 = vpop.f32.mrf.mxu0
  %v1061 = vadd.f32 %v1012, %v1060
  %v1062 = vpop.f32.mrf.mxu0
  %v1063 = vadd.f32 %v1014, %v1062
  %1064 = vmatmul.bf16.gmra.mxu0 %v236
  %v1065 = vpop.f32.mrf.mxu0
  %v1066 = vadd.f32 %v1017, %v1065
  %v1067 = vpop.f32.mrf.mxu0
  %v1068 = vadd.f32 %v1019, %v1067
  %1069 = vmatmul.bf16.gmra.mxu0 %v242
  %v1070 = vpop.f32.mrf.mxu0
  %v1071 = vadd.f32 %v1022, %v1070
  %v1072 = vpop.f32.mrf.mxu0
  %v1073 = vadd.f32 %v1024, %v1072
  %1074 = vmatmul.bf16.gmra.mxu0 %v248
  %v1075 = vpop.f32.mrf.mxu0
  %v1076 = vadd.f32 %v1027, %v1075
  %v1077 = vpop.f32.mrf.mxu0
  %v1078 = vadd.f32 %v1029, %v1077
  %1079 = vmatmul.bf16.gmra.mxu0 %v254
  %v1080 = vpop.f32.mrf.mxu0
  %v1081 = vadd.f32 %v1032, %v1080
  %v1082 = vpop.f32.mrf.mxu0
  %v1083 = vadd.f32 %v1034, %v1082
  %1084 = vmatmul.bf16.gmra.mxu0 %v260
  %v1085 = vpop.f32.mrf.mxu0
  %v1086 = vadd.f32 %v1037, %v1085
  %v1087 = vpop.f32.mrf.mxu0
  %v1088 = vadd.f32 %v1039, %v1087
  %1089 = vmatmul.bf16.gmra.mxu0 %v266
  %v1090 = vpop.f32.mrf.mxu0
  %v1091 = vadd.f32 %v1042, %v1090
  %v1092 = vpop.f32.mrf.mxu0
  %v1093 = vadd.f32 %v1044, %v1092
  %1094 = vdwg.mxu0
  %1095 = vmatpush.bf16.msra.mxu0 %v555
  %1096 = vmatpush.bf16.msra.mxu0 %v553
  %1097 = vmatpush.bf16.msra.mxu0 %v551
  %1098 = vmatpush.bf16.msra.mxu0 %v549
  %1099 = vmatpush.bf16.msra.mxu0 %v547
  %1100 = vmatpush.bf16.msra.mxu0 %v545
  %1101 = vmatpush.bf16.msra.mxu0 %v543
  %1102 = vmatpush.bf16.msra.mxu0 %v541
  %1103 = vmatmul.bf16.gmra.mxu0 %v225
  %v1104 = vpop.f32.mrf.mxu0
  %v1105 = vadd.f32 %v1056, %v1104
  %v1106 = vpop.f32.mrf.mxu0
  %v1107 = vadd.f32 %v1058, %v1106
  %1108 = vmatmul.bf16.gmra.mxu0 %v231
  %v1109 = vpop.f32.mrf.mxu0
  %v1110 = vadd.f32 %v1061, %v1109
  %v1111 = vpop.f32.mrf.mxu0
  %v1112 = vadd.f32 %v1063, %v1111
  %1113 = vmatmul.bf16.gmra.mxu0 %v237
  %v1114 = vpop.f32.mrf.mxu0
  %v1115 = vadd.f32 %v1066, %v1114
  %v1116 = vpop.f32.mrf.mxu0
  %v1117 = vadd.f32 %v1068, %v1116
  %1118 = vmatmul.bf16.gmra.mxu0 %v243
  %v1119 = vpop.f32.mrf.mxu0
  %v1120 = vadd.f32 %v1071, %v1119
  %v1121 = vpop.f32.mrf.mxu0
  %v1122 = vadd.f32 %v1073, %v1121
  %1123 = vmatmul.bf16.gmra.mxu0 %v249
  %v1124 = vpop.f32.mrf.mxu0
  %v1125 = vadd.f32 %v1076, %v1124
  %v1126 = vpop.f32.mrf.mxu0
  %v1127 = vadd.f32 %v1078, %v1126
  %1128 = vmatmul.bf16.gmra.mxu0 %v255
  %v1129 = vpop.f32.mrf.mxu0
  %v1130 = vadd.f32 %v1081, %v1129
  %v1131 = vpop.f32.mrf.mxu0
  %v1132 = vadd.f32 %v1083, %v1131
  %1133 = vmatmul.bf16.gmra.mxu0 %v261
  %v1134 = vpop.f32.mrf.mxu0
  %v1135 = vadd.f32 %v1086, %v1134
  %v1136 = vpop.f32.mrf.mxu0
  %v1137 = vadd.f32 %v1088, %v1136
  %1138 = vmatmul.bf16.gmra.mxu0 %v267
  %v1139 = vpop.f32.mrf.mxu0
  %v1140 = vadd.f32 %v1091, %v1139
  %v1141 = vpop.f32.mrf.mxu0
  %v1142 = vadd.f32 %v1093, %v1141
  %1143 = vdwg.mxu0
  %1144 = vst [vmem:[%s3] sm:$0xff] %v811
  %vm1145 = vcmask 556032
  %1146 = vst.msk [vmem:[%s3 + $0x8] sm:$0xff] %vm1145, %v1105
  %1147 = vst [vmem:[%s3 + $0x10] sm:$0xff] %v813
  %1148 = vst.msk [vmem:[%s3 + $0x18] sm:$0xff] %vm1145, %v1107
  %1149 = vst [vmem:[%s3 + $0x20] sm:$0xff] %v816
  %1150 = vst.msk [vmem:[%s3 + $0x28] sm:$0xff] %vm1145, %v1110
  %1151 = vst [vmem:[%s3 + $0x30] sm:$0xff] %v818
  %1152 = vst.msk [vmem:[%s3 + $0x38] sm:$0xff] %vm1145, %v1112
  %1153 = vst [vmem:[%s3 + $0x40] sm:$0xff] %v821
  %1154 = vst.msk [vmem:[%s3 + $0x48] sm:$0xff] %vm1145, %v1115
  %1155 = vst [vmem:[%s3 + $0x50] sm:$0xff] %v823
  %1156 = vst.msk [vmem:[%s3 + $0x58] sm:$0xff] %vm1145, %v1117
  %1157 = vst [vmem:[%s3 + $0x60] sm:$0xff] %v826
  %1158 = vst.msk [vmem:[%s3 + $0x68] sm:$0xff] %vm1145, %v1120
  %1159 = vst [vmem:[%s3 + $0x70] sm:$0xff] %v828
  %1160 = vst.msk [vmem:[%s3 + $0x78] sm:$0xff] %vm1145, %v1122
  %1161 = vst [vmem:[%s3 + $0x80] sm:$0xff] %v831
  %1162 = vst.msk [vmem:[%s3 + $0x88] sm:$0xff] %vm1145, %v1125
  %1163 = vst [vmem:[%s3 + $0x90] sm:$0xff] %v833
  %1164 = vst.msk [vmem:[%s3 + $0x98] sm:$0xff] %vm1145, %v1127
  %1165 = vst [vmem:[%s3 + $0xa0] sm:$0xff] %v836
  %1166 = vst.msk [vmem:[%s3 + $0xa8] sm:$0xff] %vm1145, %v1130
  %1167 = vst [vmem:[%s3 + $0xb0] sm:$0xff] %v838
  %1168 = vst.msk [vmem:[%s3 + $0xb8] sm:$0xff] %vm1145, %v1132
  %1169 = vst [vmem:[%s3 + $0xc0] sm:$0xff] %v841
  %1170 = vst.msk [vmem:[%s3 + $0xc8] sm:$0xff] %vm1145, %v1135
  %1171 = vst [vmem:[%s3 + $0xd0] sm:$0xff] %v843
  %1172 = vst.msk [vmem:[%s3 + $0xd8] sm:$0xff] %vm1145, %v1137
  %1173 = vst [vmem:[%s3 + $0xe0] sm:$0xff] %v846
  %1174 = vst.msk [vmem:[%s3 + $0xe8] sm:$0xff] %vm1145, %v1140
  %1175 = vst [vmem:[%s3 + $0xf0] sm:$0xff] %v848
  %1176 = vst.msk [vmem:[%s3 + $0xf8] sm:$0xff] %vm1145, %v1142
  // Predicated region
  $region14: #{tpu_custom_call.1} parent=0 // pred_check
    _
  $region15: #{tpu_custom_call.1} parent=0 // pred_check_branch
    %1178 = sbr.rel (0) target = $region17
  $region16: #{tpu_custom_call.1} parent=0 // pred_region
    _
  $region17: #{tpu_custom_call.1} parent=0 // pred_fallthru
    _
  // Predicated region
  $region18: #{tpu_custom_call.1} parent=0 // pred_check
    _
  $region19: #{tpu_custom_call.1} parent=0 // pred_check_branch
    %1180 = sbr.rel (0) target = $region21
  $region20: #{tpu_custom_call.1} parent=0 // pred_region
    _
  $region21: #{tpu_custom_call.1} parent=0 // pred_fallthru
    _

</llo_original>
